<compile_context>
chip_gen: v7x
topology: tpu7x:2x2x1
jax: 0.10.0
libtpu: 0.0.40
codegen_flags: <defaults>
</compile_context>

<pallas_src>
import functools

import jax
import jax.numpy as jnp
from jax import lax
from jax.experimental import pallas as pl
from jax.experimental.pallas import tpu as pltpu


def _round_up(x, m):
    return ((x + m - 1) // m) * m


def _w2v_kernel(mean_ref, w_ref, b_ref, out_ref):
    # mean_ref: (B, E)   bf16  context-mean embedding (V-invariant, resident)
    # w_ref:    (TN, E)  bf16  linear-weight tile, native (V, E) layout
    # b_ref:    (1, TN)  f32   bias tile
    # out_ref:  (B, TN)  f32
    out = lax.dot_general(
        mean_ref[...], w_ref[...],
        dimension_numbers=(((1,), (1,)), ((), ())),   # contract E with E (no transpose)
        preferred_element_type=jnp.float32)           # f32 MXU accumulation
    out_ref[...] = out + b_ref[...]                   # bias add in f32


def prepare_params(lin_weight, lin_bias, tile_n=512):
    """One-time (per-model) parameter prep: pad V up to a tile multiple and cast
    the weight to bf16 so the hot path streams half the HBM bytes.  The weight
    keeps its native (V, E) layout -- no transpose copy in the per-call path."""
    V, _E = lin_weight.shape
    tile_n = min(tile_n, _round_up(V, 128))
    v_pad = _round_up(V, tile_n)
    w, b = lin_weight, lin_bias
    if v_pad != V:
        w = jnp.pad(w, ((0, v_pad - V), (0, 0)))
        b = jnp.pad(b, ((0, v_pad - V),))
    return w.astype(jnp.bfloat16), b.reshape(1, v_pad).astype(jnp.float32), tile_n


@functools.partial(jax.jit, static_argnames=("tile_n", "vocab_size"))
def word2vec_forward(context, emb_weight, w_bf16, bias_2d, *, tile_n, vocab_size):
    """context: (B, C) int32; emb_weight: (V, E) f32; w_bf16: (Vp, E) bf16;
    bias_2d: (1, Vp) f32.  Returns (B, vocab_size) f32."""
    B, _C = context.shape
    E = emb_weight.shape[1]
    Vp = w_bf16.shape[0]

    # Glue (tiny, V-invariant): embedding gather + mean over the context axis,
    # hoisted out of the per-vocab-tile loop.  Mean reduced in f32, cast to
    # bf16 only as the MXU operand.
    # TODO(synk): fuse the gather into the kernel via PrefetchScalarGridSpec +
    # per-row DMA for production batch sizes; negligible at B=8.
    mean = jnp.mean(jnp.take(emb_weight, context, axis=0), axis=1)   # (B, E) f32
    mean_bf16 = mean.astype(jnp.bfloat16)

    out = pl.pallas_call(
        _w2v_kernel,
        out_shape=jax.ShapeDtypeStruct((B, Vp), jnp.float32),
        grid=(Vp // tile_n,),
        in_specs=[
            pl.BlockSpec((B, E), lambda j: (0, 0)),        # mean: resident, DMA'd once
            pl.BlockSpec((tile_n, E), lambda j: (j, 0)),   # weight: streamed, double-buffered
            pl.BlockSpec((1, tile_n), lambda j: (0, j)),   # bias tile
        ],
        out_specs=pl.BlockSpec((B, tile_n), lambda j: (0, j)),
        compiler_params=pltpu.CompilerParams(
            dimension_semantics=("parallel",)),            # V tiles are independent
        cost_estimate=pl.CostEstimate(
            flops=2 * B * E * Vp,
            transcendentals=0,
            bytes_accessed=Vp * E * 2 + B * E * 2 + B * Vp * 4 + Vp * 4),
    )(mean_bf16, w_bf16, bias_2d)

    if vocab_size != Vp:
        out = out[:, :vocab_size]
    return out


def xavier_uniform(key, shape):
    fan_out, fan_in = shape  # matches nn.Linear / nn.Embedding weight (out, in)
    bound = (6.0 / (fan_in + fan_out)) ** 0.5
    return jax.random.uniform(key, shape, jnp.float32, -bound, bound)


if __name__ == "__main__":
    # Small shapes consistent with the module's forward (embedding_dim = 300).
    VOCAB = 2048        # vocab_size
    EMBED = 300         # embedding_dim
    B, C = 8, 4         # batch of contexts, context window size
    TILE_N = 512        # vocab tile (multiple of 128)

    key = jax.random.PRNGKey(0)
    k_emb, k_lin, k_ctx = jax.random.split(key, 3)

    emb_weight = xavier_uniform(k_emb, (VOCAB, EMBED))   # nn.Embedding weight
    lin_weight = xavier_uniform(k_lin, (VOCAB, EMBED))   # nn.Linear weight (V, E)
    lin_bias = jnp.zeros((VOCAB,), jnp.float32)          # nn.Linear bias (zeros)

    context = jax.random.randint(k_ctx, (B, C), 0, VOCAB, dtype=jnp.int32)

    w_bf16, bias_2d, tile_n = prepare_params(lin_weight, lin_bias, TILE_N)

    out = word2vec_forward(context, emb_weight, w_bf16, bias_2d,
                           tile_n=tile_n, vocab_size=VOCAB)
    out = jax.block_until_ready(out)
    assert out.shape == (B, VOCAB)

    # Reference 1: same bf16 operands, f32 accumulate -> tight check vs kernel.
    mean_f32 = jnp.take(emb_weight, context, axis=0).mean(axis=1)
    ref_bf16 = (mean_f32.astype(jnp.bfloat16).astype(jnp.float32)
                @ w_bf16[:VOCAB].astype(jnp.float32).T) + lin_bias
    assert jnp.allclose(out, ref_bf16, atol=1e-4, rtol=1e-4)

    # Reference 2: full-f32 PyTorch-equivalent forward -> loose sanity check
    # (tolerance relaxed for the bf16 weight/mean cast).
    ref_f32 = mean_f32 @ lin_weight.T + lin_bias
    assert jnp.allclose(out, ref_f32, atol=5e-3, rtol=2e-2)

    print("KERNEL_OK")
</pallas_src>

<mosaic_0001>
module attributes {stable_mosaic.version = 11 : i64} {
  func.func @_w2v_kernel(%arg0: i32, %arg1: memref<8x300xbf16, #tpu.memory_space<vmem>>, %arg2: memref<512x300xbf16, #tpu.memory_space<vmem>>, %arg3: memref<1x512xf32, #tpu.memory_space<vmem>>, %arg4: memref<8x512xf32, #tpu.memory_space<vmem>>) attributes {dimension_semantics = [#tpu.dimension_semantics<parallel>], iteration_bounds = array<i64: 4>, scalar_prefetch = 0 : i64, scratch_operands = 0 : i64, tpu.core_type = #tpu.core_type<tc>, window_params = [{pipeline_mode = #tpu.pipeline_mode<synchronous>, transform_indices = @transform_0, window_bounds = array<i64: 8, 300>}, {transform_indices = @transform_1, window_bounds = array<i64: 512, 300>}, {transform_indices = @transform_2, window_bounds = array<i64: 1, 512>}, {transform_indices = @transform_3, window_bounds = array<i64: 8, 512>}]} {
    %c0 = arith.constant 0 : index
    %c0_0 = arith.constant 0 : index
    %0 = vector.load %arg1[%c0, %c0_0] : memref<8x300xbf16, #tpu.memory_space<vmem>>, vector<8x300xbf16>
    %c0_1 = arith.constant 0 : index
    %c0_2 = arith.constant 0 : index
    %1 = vector.load %arg2[%c0_1, %c0_2] : memref<512x300xbf16, #tpu.memory_space<vmem>>, vector<512x300xbf16>
    %cst = arith.constant dense<0.000000e+00> : vector<8x512xf32>
    %2 = tpu.matmul %0, %1, %cst {dimension_numbers = #tpu.dot_dimension_numbers<[1], [1], [0], [0], [0, 0, 1, 0], [], []>} : vector<8x300xbf16>, vector<512x300xbf16>, vector<8x512xf32> -> vector<8x512xf32>
    %c0_3 = arith.constant 0 : index
    %c0_4 = arith.constant 0 : index
    %3 = vector.load %arg3[%c0_3, %c0_4] : memref<1x512xf32, #tpu.memory_space<vmem>>, vector<1x512xf32>
    %4 = vector.broadcast %3 : vector<1x512xf32> to vector<8x512xf32>
    %5 = arith.addf %2, %4 : vector<8x512xf32>
    %c0_5 = arith.constant 0 : index
    %c0_6 = arith.constant 0 : index
    %6 = vector.load %arg4[%c0_5, %c0_6] : memref<8x512xf32, #tpu.memory_space<vmem>>, vector<8x512xf32>
    tpu.vector_store %arg4[%c0_5, %c0_6], %5 {strides = array<i32>} : memref<8x512xf32, #tpu.memory_space<vmem>>, vector<8x512xf32>,
    return
  }
  func.func @transform_0(%arg0: i32) -> (i32, i32) {
    %c0_i32 = arith.constant 0 : i32
    %c0_i32_0 = arith.constant 0 : i32
    %c0_i32_1 = arith.constant 0 : i32
    return %c0_i32, %c0_i32_0 : i32, i32
  }
  func.func @transform_1(%arg0: i32) -> (i32, i32) {
    %c0_i32 = arith.constant 0 : i32
    %c0_i32_0 = arith.constant 0 : i32
    return %arg0, %c0_i32 : i32, i32
  }
  func.func @transform_2(%arg0: i32) -> (i32, i32) {
    %c0_i32 = arith.constant 0 : i32
    %c0_i32_0 = arith.constant 0 : i32
    return %c0_i32, %arg0 : i32, i32
  }
  func.func @transform_3(%arg0: i32) -> (i32, i32) {
    %c0_i32 = arith.constant 0 : i32
    %c0_i32_0 = arith.constant 0 : i32
    return %c0_i32, %arg0 : i32, i32
  }
}

</mosaic_0001>

<llo_original>
// kernel: word2vec_forward.1
$region0: #{word2vec_forward.1}
  #allocation0 [shape = 'u32[]', space=smem, size = 0x4, offset = 0x4, fixed_abs, tag = 'smem constant byte address 0x4 - core index']
  #allocation1 [shape = 'u32[144,128]{1,0:T(1,128)}', space=vmem, size = 0x12000, scoped, tag = 'internal scratch']
  %s0 = inlined_call_operand.vmem [shape: bf16[8,300], index: 0, kind: input, shape index: {}]
  %s1 = inlined_call_operand.vmem [shape: bf16[2048,300], index: 1, kind: input, shape index: {}]
  %s2 = inlined_call_operand.vmem [shape: f32[1,2048], index: 2, kind: input, shape index: {}]
  %s3 = inlined_call_operand.hbm [shape: f32[8,2048], index: 3, kind: output, shape index: {}]
  %s4 = sld [smem:[#allocation0]]
  $region45: #{word2vec_forward.1} parent=0
    _
  %s6 = ssub.s32 1, %s4
  %s7 = scalar_select 0, %s6, %s4
  $region1: #{word2vec_forward.1} parent=0
    #allocation2 [shape = 'u8[32768]{0}', space=vmem, size = 0x8000, scoped, tag = 'output window, operand 0']
    #allocation3 [shape = 's32[2]{0}', space=sflag, size = 0x8, scoped, tag = 'scoped memory for word2vec_forward.1']
    %8 = vsyncpa [#allocation3], 0
    %s9 = scalar_lea.sflag [#allocation3], 1
    %10 = vsyncpa %s9, 0
    loop: start=0, step=1, limit=6
    $region2: #{word2vec_forward.1} parent=1 // loop_pre_header
      _
    $region3: #{word2vec_forward.1} parent=1 // loop_header
      %s12 = sphi 0, %s16
      %p13 = scmp.ge.s32.totalorder %s12, 6
      %s20 = sphi 0, %s20
      %s22 = sphi 0, %s20
      %s23 = sphi 0, %s22
      %s37 = sphi 0, %s23
      %s43 = sphi 0, %s45
      %s46 = sphi 0, %s43
      %s47 = sphi 0, %s46
      %s63 = sphi 0, %s47
      %s69 = sphi 0, %s71
      %s72 = sphi 0, %s69
      %s73 = sphi 0, %s72
      %s89 = sphi 0, %s73
      %s95 = sphi 0, %s97
      %s98 = sphi 0, %s95
      %s99 = sphi 0, %s98
      %s115 = sphi 0, %s99
    $region4: #{word2vec_forward.1} parent=1 // loop_header_branch
      %15 = sbr.rel (%p13) target = $region8
    $region5: #{word2vec_forward.1} parent=1 // loop_body
      %s17 = ssub.s32 %s12, 1
      %s18 = ssub.s32 %s12, 2
      %s19 = sadd.s32 %s12, 1
      %s21 = sadd.s32 %s20, 1
      %p24 = scmp.eq.s32.totalorder %s12, 3
      %p25 = scmp.ne.s32.totalorder %s20, %s22
      %p26 = scmp.eq.s32.totalorder %s12, 0
      %p27 = por %p25, %p26
      %p28 = scmp.ne.s32.totalorder %s20, %s22
      %p29 = scmp.eq.s32.totalorder %s17, 3
      %p30 = por %p28, %p29
      %p31 = scmp.ne.s32.totalorder %s22, %s23
      %p32 = scmp.eq.s32.totalorder %s17, 0
      %p33 = por %p31, %p32
      %p34 = scmp.ne.s32.totalorder %s22, %s23
      %p35 = scmp.eq.s32.totalorder %s18, 3
      %p36 = por %p34, %p35
      %p38 = scmp.ne.s32.totalorder %s23, %s37
      %p39 = scmp.eq.s32.totalorder %s18, 0
      %p40 = por %p38, %p39
      %s41 = ssub.s32 %s12, %s19
      %p42 = scmp.eq.s32.totalorder %s41, 0
      %s44 = sadd.s32 %s43, 1
      %s45 = scalar_select %p42, %s43, %s44
      %p48 = pneg %p42
      %p49 = scmp.eq.s32.totalorder %s12, 3
      %p50 = por %p48, %p49
      %p51 = scmp.ne.s32.totalorder %s43, %s46
      %p52 = scmp.eq.s32.totalorder %s12, 0
      %p53 = por %p51, %p52
      %p54 = scmp.ne.s32.totalorder %s43, %s46
      %p55 = scmp.eq.s32.totalorder %s17, 3
      %p56 = por %p54, %p55
      %p57 = scmp.ne.s32.totalorder %s46, %s47
      %p58 = scmp.eq.s32.totalorder %s17, 0
      %p59 = por %p57, %p58
      %p60 = scmp.ne.s32.totalorder %s46, %s47
      %p61 = scmp.eq.s32.totalorder %s18, 3
      %p62 = por %p60, %p61
      %p64 = scmp.ne.s32.totalorder %s47, %s63
      %p65 = scmp.eq.s32.totalorder %s18, 0
      %p66 = por %p64, %p65
      %s67 = ssub.s32 %s12, %s19
      %p68 = scmp.eq.s32.totalorder %s67, 0
      %s70 = sadd.s32 %s69, 1
      %s71 = scalar_select %p68, %s69, %s70
      %p74 = pneg %p68
      %p75 = scmp.eq.s32.totalorder %s12, 3
      %p76 = por %p74, %p75
      %p77 = scmp.ne.s32.totalorder %s69, %s72
      %p78 = scmp.eq.s32.totalorder %s12, 0
      %p79 = por %p77, %p78
      %p80 = scmp.ne.s32.totalorder %s69, %s72
      %p81 = scmp.eq.s32.totalorder %s17, 3
      %p82 = por %p80, %p81
      %p83 = scmp.ne.s32.totalorder %s72, %s73
      %p84 = scmp.eq.s32.totalorder %s17, 0
      %p85 = por %p83, %p84
      %p86 = scmp.ne.s32.totalorder %s72, %s73
      %p87 = scmp.eq.s32.totalorder %s18, 3
      %p88 = por %p86, %p87
      %p90 = scmp.ne.s32.totalorder %s73, %s89
      %p91 = scmp.eq.s32.totalorder %s18, 0
      %p92 = por %p90, %p91
      %s93 = ssub.s32 %s12, %s19
      %p94 = scmp.eq.s32.totalorder %s93, 0
      %s96 = sadd.s32 %s95, 1
      %s97 = scalar_select %p94, %s95, %s96
      %p100 = pneg %p94
      %p101 = scmp.eq.s32.totalorder %s12, 3
      %p102 = por %p100, %p101
      %p103 = scmp.ne.s32.totalorder %s95, %s98
      %p104 = scmp.eq.s32.totalorder %s12, 0
      %p105 = por %p103, %p104
      %p106 = scmp.ne.s32.totalorder %s95, %s98
      %p107 = scmp.eq.s32.totalorder %s17, 3
      %p108 = por %p106, %p107
      %p109 = scmp.ne.s32.totalorder %s98, %s99
      %p110 = scmp.eq.s32.totalorder %s17, 0
      %p111 = por %p109, %p110
      %p112 = scmp.ne.s32.totalorder %s98, %s99
      %p113 = scmp.eq.s32.totalorder %s18, 3
      %p114 = por %p112, %p113
      %p116 = scmp.ne.s32.totalorder %s99, %s115
      %p117 = scmp.eq.s32.totalorder %s18, 0
      %p118 = por %p116, %p117
      %p119 = scmp.le.s32.totalorder 1, %s12
      %p120 = scmp.lt.s32.totalorder %s12, 5
      %p121 = pnand %p119, %p120
      %p122 = pneg %p121
      // Predicated region
      $region9: #{word2vec_forward.1} parent=5 // pred_check
        _
      $region10: #{word2vec_forward.1} parent=5 // pred_check_branch
        %124 = sbr.rel (%p121) target = $region12
      $region11: #{word2vec_forward.1} parent=5 // pred_region
        %s125 = ssub.s32 %s12, 1
        // Predicated region
        $region13: #{word2vec_forward.1} parent=11 // pred_check
          %p126 = pneg %p33
        $region14: #{word2vec_forward.1} parent=11 // pred_check_branch
          %128 = sbr.rel (%p126) target = $region16
        $region15: #{word2vec_forward.1} parent=11 // pred_region
          _
        $region16: #{word2vec_forward.1} parent=11 // pred_fallthru
          _
      $region12: #{word2vec_forward.1} parent=5 // pred_fallthru
        _
      %p129 = scmp.lt.s32.totalorder %s12, 4
      // Predicated region
      $region17: #{word2vec_forward.1} parent=5 // pred_check
        %p130 = pneg %p129
      $region18: #{word2vec_forward.1} parent=5 // pred_check_branch
        %132 = sbr.rel (%p130) target = $region20
      $region19: #{word2vec_forward.1} parent=5 // pred_region
        // Predicated region
        $region21: #{word2vec_forward.1} parent=19 // pred_check
          %p133 = pneg %p53
        $region22: #{word2vec_forward.1} parent=19 // pred_check_branch
          %135 = sbr.rel (%p133) target = $region24
        $region23: #{word2vec_forward.1} parent=19 // pred_region
          %s136 = smul.u32 64, %s12
          %p137 = scmp.lt.s32.totalorder %s136, 255
          %s138 = scalar_select %p137, %s136, 255
          %s139 = smul.addr %s138, 3
          %s140 = smul.addr %s139, 4
          %s141 = scalar_lea.vmem %s1, %s140
          %s142 = smul.u32 64, %s12
        $region24: #{word2vec_forward.1} parent=19 // pred_fallthru
          _
        // Predicated region
        $region25: #{word2vec_forward.1} parent=19 // pred_check
          %p143 = pneg %p79
        $region26: #{word2vec_forward.1} parent=19 // pred_check_branch
          %145 = sbr.rel (%p143) target = $region28
        $region27: #{word2vec_forward.1} parent=19 // pred_region
          %s146 = smul.u32 4, %s12
          %p147 = scmp.lt.s32.totalorder %s146, 15
          %s148 = scalar_select %p147, %s146, 15
          %s149 = scalar_lea.vmem %s2, %s148
          %s150 = smul.u32 4, %s12
        $region28: #{word2vec_forward.1} parent=19 // pred_fallthru
          _
      $region20: #{word2vec_forward.1} parent=5 // pred_fallthru
        _
      %p151 = scmp.le.s32.totalorder 1, %s12
      %p152 = scmp.lt.s32.totalorder %s12, 5
      %p153 = pnand %p151, %p152
      %p154 = pneg %p153
      // Predicated region
      $region29: #{word2vec_forward.1} parent=5 // pred_check
        _
      $region30: #{word2vec_forward.1} parent=5 // pred_check_branch
        %156 = sbr.rel (%p153) target = $region32
      $region31: #{word2vec_forward.1} parent=5 // pred_region
        %s157 = ssub.s32 %s12, 1
        %p158 = pneg %p33
        %p159 = pneg %p30
        %s160 = smul.u32 64, %s17
        %p161 = scmp.lt.s32.totalorder %s160, 255
        %s162 = scalar_select %p161, %s160, 255
        %s163 = smul.addr %s162, 3
        %s164 = smul.addr %s163, 4
        %s165 = scalar_lea.vmem %s1, %s164
        %p166 = pneg %p59
        %p167 = pneg %p56
        %s168 = smul.u32 4, %s17
        %p169 = scmp.lt.s32.totalorder %s168, 15
        %s170 = scalar_select %p169, %s168, 15
        %s171 = scalar_lea.vmem %s2, %s170
        %p172 = pneg %p85
        %p173 = pneg %p82
        %p174 = pneg %p111
        %p175 = pneg %p108
        %s176 = sand.u32 %s98, 1
        %s177 = scalar_lea.sflag [#allocation3], %s176
        %s178 = sand.u32 %s98, 1
        %s179 = smul.addr %s178, 32
        %s180 = scalar_lea.vmem [#allocation2], %s179
        %s181 = smul.u32 64, %s17
        %p182 = scmp.lt.s32.totalorder %s181, 255
        %s183 = scalar_select %p182, %s181, 255
        %s184 = smul.addr %s183, 3
        %s185 = smul.addr %s184, 4
        %s186 = scalar_lea.vmem %s1, %s185
        %s187 = smul.u32 64, %s17
        %s188 = smul.u32 4, %s17
        %p189 = scmp.lt.s32.totalorder %s188, 15
        %s190 = scalar_select %p189, %s188, 15
        %s191 = scalar_lea.vmem %s2, %s190
        %s192 = smul.u32 4, %s17
        %s193 = smul.u32 4, %s17
        %v195 = vld [vmem:[%s0] sm:$0xff]
        %v196 = vld [vmem:[%s0 + $0x8] sm:$0xf]
        %v197 = vld [vmem:[%s186] sm:$0xff]
        %v198 = vld [vmem:[%s186 + $0x8] sm:$0xf]
        %v199 = vld [vmem:[%s186 + $0xc] sm:$0xff]
        %v200 = vld [vmem:[%s186 + $0x14] sm:$0xf]
        %v201 = vld [vmem:[%s186 + $0x18] sm:$0xff]
        %v202 = vld [vmem:[%s186 + $0x20] sm:$0xf]
        %v203 = vld [vmem:[%s186 + $0x24] sm:$0xff]
        %v204 = vld [vmem:[%s186 + $0x2c] sm:$0xf]
        %v205 = vld [vmem:[%s186 + $0x30] sm:$0xff]
        %v206 = vld [vmem:[%s186 + $0x38] sm:$0xf]
        %v207 = vld [vmem:[%s186 + $0x3c] sm:$0xff]
        %v208 = vld [vmem:[%s186 + $0x44] sm:$0xf]
        %v209 = vld [vmem:[%s186 + $0x48] sm:$0xff]
        %v210 = vld [vmem:[%s186 + $0x50] sm:$0xf]
        %v211 = vld [vmem:[%s186 + $0x54] sm:$0xff]
        %v212 = vld [vmem:[%s186 + $0x5c] sm:$0xf]
        %v213 = vld [vmem:[%s186 + $0x60] sm:$0xff]
        %v214 = vld [vmem:[%s186 + $0x68] sm:$0xf]
        %v215 = vld [vmem:[%s186 + $0x6c] sm:$0xff]
        %v216 = vld [vmem:[%s186 + $0x74] sm:$0xf]
        %v217 = vld [vmem:[%s186 + $0x78] sm:$0xff]
        %v218 = vld [vmem:[%s186 + $0x80] sm:$0xf]
        %v219 = vld [vmem:[%s186 + $0x84] sm:$0xff]
        %v220 = vld [vmem:[%s186 + $0x8c] sm:$0xf]
        %v221 = vld [vmem:[%s186 + $0x90] sm:$0xff]
        %v222 = vld [vmem:[%s186 + $0x98] sm:$0xf]
        %v223 = vld [vmem:[%s186 + $0x9c] sm:$0xff]
        %v224 = vld [vmem:[%s186 + $0xa4] sm:$0xf]
        %v225 = vld [vmem:[%s186 + $0xa8] sm:$0xff]
        %v226 = vld [vmem:[%s186 + $0xb0] sm:$0xf]
        %v227 = vld [vmem:[%s186 + $0xb4] sm:$0xff]
        %v228 = vld [vmem:[%s186 + $0xbc] sm:$0xf]
        %v229 = vld [vmem:[%s186 + $0xc0] sm:$0xff]
        %v230 = vld [vmem:[%s186 + $0xc8] sm:$0xf]
        %v231 = vld [vmem:[%s186 + $0xcc] sm:$0xff]
        %v232 = vld [vmem:[%s186 + $0xd4] sm:$0xf]
        %v233 = vld [vmem:[%s186 + $0xd8] sm:$0xff]
        %v234 = vld [vmem:[%s186 + $0xe0] sm:$0xf]
        %v235 = vld [vmem:[%s186 + $0xe4] sm:$0xff]
        %v236 = vld [vmem:[%s186 + $0xec] sm:$0xf]
        %v237 = vld [vmem:[%s186 + $0xf0] sm:$0xff]
        %v238 = vld [vmem:[%s186 + $0xf8] sm:$0xf]
        %v239 = vld [vmem:[%s186 + $0xfc] sm:$0xff]
        %v240 = vld [vmem:[%s186 + $0x104] sm:$0xf]
        %v241 = vld [vmem:[%s186 + $0x108] sm:$0xff]
        %v242 = vld [vmem:[%s186 + $0x110] sm:$0xf]
        %v243 = vld [vmem:[%s186 + $0x114] sm:$0xff]
        %v244 = vld [vmem:[%s186 + $0x11c] sm:$0xf]
        %v245 = vld [vmem:[%s186 + $0x120] sm:$0xff]
        %v246 = vld [vmem:[%s186 + $0x128] sm:$0xf]
        %v247 = vld [vmem:[%s186 + $0x12c] sm:$0xff]
        %v248 = vld [vmem:[%s186 + $0x134] sm:$0xf]
        %v249 = vld [vmem:[%s186 + $0x138] sm:$0xff]
        %v250 = vld [vmem:[%s186 + $0x140] sm:$0xf]
        %v251 = vld [vmem:[%s186 + $0x144] sm:$0xff]
        %v252 = vld [vmem:[%s186 + $0x14c] sm:$0xf]
        %v253 = vld [vmem:[%s186 + $0x150] sm:$0xff]
        %v254 = vld [vmem:[%s186 + $0x158] sm:$0xf]
        %v255 = vld [vmem:[%s186 + $0x15c] sm:$0xff]
        %v256 = vld [vmem:[%s186 + $0x164] sm:$0xf]
        %v257 = vld [vmem:[%s186 + $0x168] sm:$0xff]
        %v258 = vld [vmem:[%s186 + $0x170] sm:$0xf]
        %v259 = vld [vmem:[%s186 + $0x174] sm:$0xff]
        %v260 = vld [vmem:[%s186 + $0x17c] sm:$0xf]
        %v261 = vld [vmem:[%s186 + $0x180] sm:$0xff]
        %v262 = vld [vmem:[%s186 + $0x188] sm:$0xf]
        %v263 = vld [vmem:[%s186 + $0x18c] sm:$0xff]
        %v264 = vld [vmem:[%s186 + $0x194] sm:$0xf]
        %v265 = vld [vmem:[%s186 + $0x198] sm:$0xff]
        %v266 = vld [vmem:[%s186 + $0x1a0] sm:$0xf]
        %v267 = vld [vmem:[%s186 + $0x1a4] sm:$0xff]
        %v268 = vld [vmem:[%s186 + $0x1ac] sm:$0xf]
        %v269 = vld [vmem:[%s186 + $0x1b0] sm:$0xff]
        %v270 = vld [vmem:[%s186 + $0x1b8] sm:$0xf]
        %v271 = vld [vmem:[%s186 + $0x1bc] sm:$0xff]
        %v272 = vld [vmem:[%s186 + $0x1c4] sm:$0xf]
        %v273 = vld [vmem:[%s186 + $0x1c8] sm:$0xff]
        %v274 = vld [vmem:[%s186 + $0x1d0] sm:$0xf]
        %v275 = vld [vmem:[%s186 + $0x1d4] sm:$0xff]
        %v276 = vld [vmem:[%s186 + $0x1dc] sm:$0xf]
        %v277 = vld [vmem:[%s186 + $0x1e0] sm:$0xff]
        %v278 = vld [vmem:[%s186 + $0x1e8] sm:$0xf]
        %v279 = vld [vmem:[%s186 + $0x1ec] sm:$0xff]
        %v280 = vld [vmem:[%s186 + $0x1f4] sm:$0xf]
        %v281 = vld [vmem:[%s186 + $0x1f8] sm:$0xff]
        %v282 = vld [vmem:[%s186 + $0x200] sm:$0xf]
        %v283 = vld [vmem:[%s186 + $0x204] sm:$0xff]
        %v284 = vld [vmem:[%s186 + $0x20c] sm:$0xf]
        %v285 = vld [vmem:[%s186 + $0x210] sm:$0xff]
        %v286 = vld [vmem:[%s186 + $0x218] sm:$0xf]
        %v287 = vld [vmem:[%s186 + $0x21c] sm:$0xff]
        %v288 = vld [vmem:[%s186 + $0x224] sm:$0xf]
        %v289 = vld [vmem:[%s186 + $0x228] sm:$0xff]
        %v290 = vld [vmem:[%s186 + $0x230] sm:$0xf]
        %v291 = vld [vmem:[%s186 + $0x234] sm:$0xff]
        %v292 = vld [vmem:[%s186 + $0x23c] sm:$0xf]
        %v293 = vld [vmem:[%s186 + $0x240] sm:$0xff]
        %v294 = vld [vmem:[%s186 + $0x248] sm:$0xf]
        %v295 = vld [vmem:[%s186 + $0x24c] sm:$0xff]
        %v296 = vld [vmem:[%s186 + $0x254] sm:$0xf]
        %v297 = vld [vmem:[%s186 + $0x258] sm:$0xff]
        %v298 = vld [vmem:[%s186 + $0x260] sm:$0xf]
        %v299 = vld [vmem:[%s186 + $0x264] sm:$0xff]
        %v300 = vld [vmem:[%s186 + $0x26c] sm:$0xf]
        %v301 = vld [vmem:[%s186 + $0x270] sm:$0xff]
        %v302 = vld [vmem:[%s186 + $0x278] sm:$0xf]
        %v303 = vld [vmem:[%s186 + $0x27c] sm:$0xff]
        %v304 = vld [vmem:[%s186 + $0x284] sm:$0xf]
        %v305 = vld [vmem:[%s186 + $0x288] sm:$0xff]
        %v306 = vld [vmem:[%s186 + $0x290] sm:$0xf]
        %v307 = vld [vmem:[%s186 + $0x294] sm:$0xff]
        %v308 = vld [vmem:[%s186 + $0x29c] sm:$0xf]
        %v309 = vld [vmem:[%s186 + $0x2a0] sm:$0xff]
        %v310 = vld [vmem:[%s186 + $0x2a8] sm:$0xf]
        %v311 = vld [vmem:[%s186 + $0x2ac] sm:$0xff]
        %v312 = vld [vmem:[%s186 + $0x2b4] sm:$0xf]
        %v313 = vld [vmem:[%s186 + $0x2b8] sm:$0xff]
        %v314 = vld [vmem:[%s186 + $0x2c0] sm:$0xf]
        %v315 = vld [vmem:[%s186 + $0x2c4] sm:$0xff]
        %v316 = vld [vmem:[%s186 + $0x2cc] sm:$0xf]
        %v317 = vld [vmem:[%s186 + $0x2d0] sm:$0xff]
        %v318 = vld [vmem:[%s186 + $0x2d8] sm:$0xf]
        %v319 = vld [vmem:[%s186 + $0x2dc] sm:$0xff]
        %v320 = vld [vmem:[%s186 + $0x2e4] sm:$0xf]
        %v321 = vld [vmem:[%s186 + $0x2e8] sm:$0xff]
        %v322 = vld [vmem:[%s186 + $0x2f0] sm:$0xf]
        %v323 = vld [vmem:[%s186 + $0x2f4] sm:$0xff]
        %v324 = vld [vmem:[%s186 + $0x2fc] sm:$0xf]
        %v325 = vld [vmem:[%s191] sm:$0xf]
        %v327 = vlaneseq
        %v328 = vshrl.u32 %v327, 7
        %v329 = vsub.s32 0, %v328
        %v330 = vrot.slane %v325, %v329
        %v331 = vlaneseq
        %v332 = vshrl.u32 %v331, 7
        %v333 = vsub.s32 1, %v332
        %v334 = vrot.slane %v325, %v333
        %v335 = vlaneseq
        %v336 = vshrl.u32 %v335, 7
        %v337 = vsub.s32 2, %v336
        %v338 = vrot.slane %v325, %v337
        %v339 = vlaneseq
        %v340 = vshrl.u32 %v339, 7
        %v341 = vsub.s32 3, %v340
        %v342 = vrot.slane %v325, %v341
        %v349 = vunpack.c.l.b16 %v195
        %v350 = vunpack.c.h.b16 %v195
        %v351 = vunpack.c.l.b16 %v196
        %v352 = vpack.c.b16 %v349, %v349
        %v353 = vpack.c.b16 %v350, %v350
        %v354 = vpack.c.b16 %v351, %v351
        %v485 = vunpack.c.l.b16 %v197
        %v486 = vunpack.c.h.b16 %v197
        %v487 = vunpack.c.l.b16 %v198
        %v488 = vunpack.c.l.b16 %v199
        %v489 = vunpack.c.h.b16 %v199
        %v490 = vunpack.c.l.b16 %v200
        %v491 = vunpack.c.l.b16 %v201
        %v492 = vunpack.c.h.b16 %v201
        %v493 = vunpack.c.l.b16 %v202
        %v494 = vunpack.c.l.b16 %v203
        %v495 = vunpack.c.h.b16 %v203
        %v496 = vunpack.c.l.b16 %v204
        %v497 = vunpack.c.l.b16 %v205
        %v498 = vunpack.c.h.b16 %v205
        %v499 = vunpack.c.l.b16 %v206
        %v500 = vunpack.c.l.b16 %v207
        %v501 = vunpack.c.h.b16 %v207
        %v502 = vunpack.c.l.b16 %v208
        %v503 = vunpack.c.l.b16 %v209
        %v504 = vunpack.c.h.b16 %v209
        %v505 = vunpack.c.l.b16 %v210
        %v506 = vunpack.c.l.b16 %v211
        %v507 = vunpack.c.h.b16 %v211
        %v508 = vunpack.c.l.b16 %v212
        %v509 = vunpack.c.l.b16 %v213
        %v510 = vunpack.c.h.b16 %v213
        %v511 = vunpack.c.l.b16 %v214
        %v512 = vunpack.c.l.b16 %v215
        %v513 = vunpack.c.h.b16 %v215
        %v514 = vunpack.c.l.b16 %v216
        %v515 = vunpack.c.l.b16 %v217
        %v516 = vunpack.c.h.b16 %v217
        %v517 = vunpack.c.l.b16 %v218
        %v518 = vunpack.c.l.b16 %v219
        %v519 = vunpack.c.h.b16 %v219
        %v520 = vunpack.c.l.b16 %v220
        %v521 = vunpack.c.l.b16 %v221
        %v522 = vunpack.c.h.b16 %v221
        %v523 = vunpack.c.l.b16 %v222
        %v524 = vunpack.c.l.b16 %v223
        %v525 = vunpack.c.h.b16 %v223
        %v526 = vunpack.c.l.b16 %v224
        %v527 = vunpack.c.l.b16 %v225
        %v528 = vunpack.c.h.b16 %v225
        %v529 = vunpack.c.l.b16 %v226
        %v530 = vunpack.c.l.b16 %v227
        %v531 = vunpack.c.h.b16 %v227
        %v532 = vunpack.c.l.b16 %v228
        %v533 = vunpack.c.l.b16 %v229
        %v534 = vunpack.c.h.b16 %v229
        %v535 = vunpack.c.l.b16 %v230
        %v536 = vunpack.c.l.b16 %v231
        %v537 = vunpack.c.h.b16 %v231
        %v538 = vunpack.c.l.b16 %v232
        %v539 = vunpack.c.l.b16 %v233
        %v540 = vunpack.c.h.b16 %v233
        %v541 = vunpack.c.l.b16 %v234
        %v542 = vunpack.c.l.b16 %v235
        %v543 = vunpack.c.h.b16 %v235
        %v544 = vunpack.c.l.b16 %v236
        %v545 = vunpack.c.l.b16 %v237
        %v546 = vunpack.c.h.b16 %v237
        %v547 = vunpack.c.l.b16 %v238
        %v548 = vunpack.c.l.b16 %v239
        %v549 = vunpack.c.h.b16 %v239
        %v550 = vunpack.c.l.b16 %v240
        %v551 = vunpack.c.l.b16 %v241
        %v552 = vunpack.c.h.b16 %v241
        %v553 = vunpack.c.l.b16 %v242
        %v554 = vunpack.c.l.b16 %v243
        %v555 = vunpack.c.h.b16 %v243
        %v556 = vunpack.c.l.b16 %v244
        %v557 = vunpack.c.l.b16 %v245
        %v558 = vunpack.c.h.b16 %v245
        %v559 = vunpack.c.l.b16 %v246
        %v560 = vunpack.c.l.b16 %v247
        %v561 = vunpack.c.h.b16 %v247
        %v562 = vunpack.c.l.b16 %v248
        %v563 = vunpack.c.l.b16 %v249
        %v564 = vunpack.c.h.b16 %v249
        %v565 = vunpack.c.l.b16 %v250
        %v566 = vunpack.c.l.b16 %v251
        %v567 = vunpack.c.h.b16 %v251
        %v568 = vunpack.c.l.b16 %v252
        %v569 = vunpack.c.l.b16 %v253
        %v570 = vunpack.c.h.b16 %v253
        %v571 = vunpack.c.l.b16 %v254
        %v572 = vunpack.c.l.b16 %v255
        %v573 = vunpack.c.h.b16 %v255
        %v574 = vunpack.c.l.b16 %v256
        %v575 = vunpack.c.l.b16 %v257
        %v576 = vunpack.c.h.b16 %v257
        %v577 = vunpack.c.l.b16 %v258
        %v578 = vunpack.c.l.b16 %v259
        %v579 = vunpack.c.h.b16 %v259
        %v580 = vunpack.c.l.b16 %v260
        %v581 = vunpack.c.l.b16 %v261
        %v582 = vunpack.c.h.b16 %v261
        %v583 = vunpack.c.l.b16 %v262
        %v584 = vunpack.c.l.b16 %v263
        %v585 = vunpack.c.h.b16 %v263
        %v586 = vunpack.c.l.b16 %v264
        %v587 = vunpack.c.l.b16 %v265
        %v588 = vunpack.c.h.b16 %v265
        %v589 = vunpack.c.l.b16 %v266
        %v590 = vunpack.c.l.b16 %v267
        %v591 = vunpack.c.h.b16 %v267
        %v592 = vunpack.c.l.b16 %v268
        %v593 = vunpack.c.l.b16 %v269
        %v594 = vunpack.c.h.b16 %v269
        %v595 = vunpack.c.l.b16 %v270
        %v596 = vunpack.c.l.b16 %v271
        %v597 = vunpack.c.h.b16 %v271
        %v598 = vunpack.c.l.b16 %v272
        %v599 = vunpack.c.l.b16 %v273
        %v600 = vunpack.c.h.b16 %v273
        %v601 = vunpack.c.l.b16 %v274
        %v602 = vunpack.c.l.b16 %v275
        %v603 = vunpack.c.h.b16 %v275
        %v604 = vunpack.c.l.b16 %v276
        %v605 = vunpack.c.l.b16 %v277
        %v606 = vunpack.c.h.b16 %v277
        %v607 = vunpack.c.l.b16 %v278
        %v608 = vunpack.c.l.b16 %v279
        %v609 = vunpack.c.h.b16 %v279
        %v610 = vunpack.c.l.b16 %v280
        %v611 = vunpack.c.l.b16 %v281
        %v612 = vunpack.c.h.b16 %v281
        %v613 = vunpack.c.l.b16 %v282
        %v614 = vunpack.c.l.b16 %v283
        %v615 = vunpack.c.h.b16 %v283
        %v616 = vunpack.c.l.b16 %v284
        %v617 = vunpack.c.l.b16 %v285
        %v618 = vunpack.c.h.b16 %v285
        %v619 = vunpack.c.l.b16 %v286
        %v620 = vunpack.c.l.b16 %v287
        %v621 = vunpack.c.h.b16 %v287
        %v622 = vunpack.c.l.b16 %v288
        %v623 = vunpack.c.l.b16 %v289
        %v624 = vunpack.c.h.b16 %v289
        %v625 = vunpack.c.l.b16 %v290
        %v626 = vunpack.c.l.b16 %v291
        %v627 = vunpack.c.h.b16 %v291
        %v628 = vunpack.c.l.b16 %v292
        %v629 = vunpack.c.l.b16 %v293
        %v630 = vunpack.c.h.b16 %v293
        %v631 = vunpack.c.l.b16 %v294
        %v632 = vunpack.c.l.b16 %v295
        %v633 = vunpack.c.h.b16 %v295
        %v634 = vunpack.c.l.b16 %v296
        %v635 = vunpack.c.l.b16 %v297
        %v636 = vunpack.c.h.b16 %v297
        %v637 = vunpack.c.l.b16 %v298
        %v638 = vunpack.c.l.b16 %v299
        %v639 = vunpack.c.h.b16 %v299
        %v640 = vunpack.c.l.b16 %v300
        %v641 = vunpack.c.l.b16 %v301
        %v642 = vunpack.c.h.b16 %v301
        %v643 = vunpack.c.l.b16 %v302
        %v644 = vunpack.c.l.b16 %v303
        %v645 = vunpack.c.h.b16 %v303
        %v646 = vunpack.c.l.b16 %v304
        %v647 = vunpack.c.l.b16 %v305
        %v648 = vunpack.c.h.b16 %v305
        %v649 = vunpack.c.l.b16 %v306
        %v650 = vunpack.c.l.b16 %v307
        %v651 = vunpack.c.h.b16 %v307
        %v652 = vunpack.c.l.b16 %v308
        %v653 = vunpack.c.l.b16 %v309
        %v654 = vunpack.c.h.b16 %v309
        %v655 = vunpack.c.l.b16 %v310
        %v656 = vunpack.c.l.b16 %v311
        %v657 = vunpack.c.h.b16 %v311
        %v658 = vunpack.c.l.b16 %v312
        %v659 = vunpack.c.l.b16 %v313
        %v660 = vunpack.c.h.b16 %v313
        %v661 = vunpack.c.l.b16 %v314
        %v662 = vunpack.c.l.b16 %v315
        %v663 = vunpack.c.h.b16 %v315
        %v664 = vunpack.c.l.b16 %v316
        %v665 = vunpack.c.l.b16 %v317
        %v666 = vunpack.c.h.b16 %v317
        %v667 = vunpack.c.l.b16 %v318
        %v668 = vunpack.c.l.b16 %v319
        %v669 = vunpack.c.h.b16 %v319
        %v670 = vunpack.c.l.b16 %v320
        %v671 = vunpack.c.l.b16 %v321
        %v672 = vunpack.c.h.b16 %v321
        %v673 = vunpack.c.l.b16 %v322
        %v674 = vunpack.c.l.b16 %v323
        %v675 = vunpack.c.h.b16 %v323
        %v676 = vunpack.c.l.b16 %v324
        %v677 = vpack.c.b16 %v488, %v485
        %v678 = vpack.c.b16 %v489, %v486
        %v679 = vpack.c.b16 %v490, %v487
        %v680 = vpack.c.b16 %v494, %v491
        %v681 = vpack.c.b16 %v495, %v492
        %v682 = vpack.c.b16 %v496, %v493
        %v683 = vpack.c.b16 %v500, %v497
        %v684 = vpack.c.b16 %v501, %v498
        %v685 = vpack.c.b16 %v502, %v499
        %v686 = vpack.c.b16 %v506, %v503
        %v687 = vpack.c.b16 %v507, %v504
        %v688 = vpack.c.b16 %v508, %v505
        %v689 = vpack.c.b16 %v512, %v509
        %v690 = vpack.c.b16 %v513, %v510
        %v691 = vpack.c.b16 %v514, %v511
        %v692 = vpack.c.b16 %v518, %v515
        %v693 = vpack.c.b16 %v519, %v516
        %v694 = vpack.c.b16 %v520, %v517
        %v695 = vpack.c.b16 %v524, %v521
        %v696 = vpack.c.b16 %v525, %v522
        %v697 = vpack.c.b16 %v526, %v523
        %v698 = vpack.c.b16 %v530, %v527
        %v699 = vpack.c.b16 %v531, %v528
        %v700 = vpack.c.b16 %v532, %v529
        %v701 = vpack.c.b16 %v536, %v533
        %v702 = vpack.c.b16 %v537, %v534
        %v703 = vpack.c.b16 %v538, %v535
        %v704 = vpack.c.b16 %v542, %v539
        %v705 = vpack.c.b16 %v543, %v540
        %v706 = vpack.c.b16 %v544, %v541
        %v707 = vpack.c.b16 %v548, %v545
        %v708 = vpack.c.b16 %v549, %v546
        %v709 = vpack.c.b16 %v550, %v547
        %v710 = vpack.c.b16 %v554, %v551
        %v711 = vpack.c.b16 %v555, %v552
        %v712 = vpack.c.b16 %v556, %v553
        %v713 = vpack.c.b16 %v560, %v557
        %v714 = vpack.c.b16 %v561, %v558
        %v715 = vpack.c.b16 %v562, %v559
        %v716 = vpack.c.b16 %v566, %v563
        %v717 = vpack.c.b16 %v567, %v564
        %v718 = vpack.c.b16 %v568, %v565
        %v719 = vpack.c.b16 %v572, %v569
        %v720 = vpack.c.b16 %v573, %v570
        %v721 = vpack.c.b16 %v574, %v571
        %v722 = vpack.c.b16 %v578, %v575
        %v723 = vpack.c.b16 %v579, %v576
        %v724 = vpack.c.b16 %v580, %v577
        %v725 = vpack.c.b16 %v584, %v581
        %v726 = vpack.c.b16 %v585, %v582
        %v727 = vpack.c.b16 %v586, %v583
        %v728 = vpack.c.b16 %v590, %v587
        %v729 = vpack.c.b16 %v591, %v588
        %v730 = vpack.c.b16 %v592, %v589
        %v731 = vpack.c.b16 %v596, %v593
        %v732 = vpack.c.b16 %v597, %v594
        %v733 = vpack.c.b16 %v598, %v595
        %v734 = vpack.c.b16 %v602, %v599
        %v735 = vpack.c.b16 %v603, %v600
        %v736 = vpack.c.b16 %v604, %v601
        %v737 = vpack.c.b16 %v608, %v605
        %v738 = vpack.c.b16 %v609, %v606
        %v739 = vpack.c.b16 %v610, %v607
        %v740 = vpack.c.b16 %v614, %v611
        %v741 = vpack.c.b16 %v615, %v612
        %v742 = vpack.c.b16 %v616, %v613
        %v743 = vpack.c.b16 %v620, %v617
        %v744 = vpack.c.b16 %v621, %v618
        %v745 = vpack.c.b16 %v622, %v619
        %v746 = vpack.c.b16 %v626, %v623
        %v747 = vpack.c.b16 %v627, %v624
        %v748 = vpack.c.b16 %v628, %v625
        %v749 = vpack.c.b16 %v632, %v629
        %v750 = vpack.c.b16 %v633, %v630
        %v751 = vpack.c.b16 %v634, %v631
        %v752 = vpack.c.b16 %v638, %v635
        %v753 = vpack.c.b16 %v639, %v636
        %v754 = vpack.c.b16 %v640, %v637
        %v755 = vpack.c.b16 %v644, %v641
        %v756 = vpack.c.b16 %v645, %v642
        %v757 = vpack.c.b16 %v646, %v643
        %v758 = vpack.c.b16 %v650, %v647
        %v759 = vpack.c.b16 %v651, %v648
        %v760 = vpack.c.b16 %v652, %v649
        %v761 = vpack.c.b16 %v656, %v653
        %v762 = vpack.c.b16 %v657, %v654
        %v763 = vpack.c.b16 %v658, %v655
        %v764 = vpack.c.b16 %v662, %v659
        %v765 = vpack.c.b16 %v663, %v660
        %v766 = vpack.c.b16 %v664, %v661
        %v767 = vpack.c.b16 %v668, %v665
        %v768 = vpack.c.b16 %v669, %v666
        %v769 = vpack.c.b16 %v670, %v667
        %v770 = vpack.c.b16 %v674, %v671
        %v771 = vpack.c.b16 %v675, %v672
        %v772 = vpack.c.b16 %v676, %v673
        %vm837 = vcmask 359424
        %v839 = vsel %vm837, %v354, 0
        %v842 = vsel %vm837, %v679, 0
        %v845 = vsel %vm837, %v682, 0
        %v848 = vsel %vm837, %v685, 0
        %v851 = vsel %vm837, %v688, 0
        %v854 = vsel %vm837, %v691, 0
        %v857 = vsel %vm837, %v694, 0
        %v860 = vsel %vm837, %v697, 0
        %v863 = vsel %vm837, %v700, 0
        %v866 = vsel %vm837, %v703, 0
        %v869 = vsel %vm837, %v706, 0
        %v872 = vsel %vm837, %v709, 0
        %v875 = vsel %vm837, %v712, 0
        %v878 = vsel %vm837, %v715, 0
        %v881 = vsel %vm837, %v718, 0
        %v884 = vsel %vm837, %v721, 0
        %v887 = vsel %vm837, %v724, 0
        %v890 = vsel %vm837, %v727, 0
        %v893 = vsel %vm837, %v730, 0
        %v896 = vsel %vm837, %v733, 0
        %v899 = vsel %vm837, %v736, 0
        %v902 = vsel %vm837, %v739, 0
        %v905 = vsel %vm837, %v742, 0
        %v908 = vsel %vm837, %v745, 0
        %v911 = vsel %vm837, %v748, 0
        %v914 = vsel %vm837, %v751, 0
        %v917 = vsel %vm837, %v754, 0
        %v920 = vsel %vm837, %v757, 0
        %v923 = vsel %vm837, %v760, 0
        %v926 = vsel %vm837, %v763, 0
        %v929 = vsel %vm837, %v766, 0
        %v932 = vsel %vm837, %v769, 0
        %v935 = vsel %vm837, %v772, 0
        %937 = vmatprep.subr.bf16.mxu0 %v678
        %938 = vmatpush1.bf16.xpose.msra.mxu0 %v677
        %939 = vmatprep.subr.bf16.mxu0 %v681
        %940 = vmatpush1.bf16.xpose.msra.mxu0 %v680
        %941 = vmatprep.subr.bf16.mxu0 %v684
        %942 = vmatpush1.bf16.xpose.msra.mxu0 %v683
        %943 = vmatprep.subr.bf16.mxu0 %v687
        %944 = vmatpush1.bf16.xpose.msra.mxu0 %v686
        %945 = vmatprep.subr.bf16.mxu0 %v690
        %946 = vmatpush1.bf16.xpose.msra.mxu0 %v689
        %947 = vmatprep.subr.bf16.mxu0 %v693
        %948 = vmatpush1.bf16.xpose.msra.mxu0 %v692
        %949 = vmatprep.subr.bf16.mxu0 %v696
        %950 = vmatpush1.bf16.xpose.msra.mxu0 %v695
        %951 = vmatprep.subr.bf16.mxu0 %v699
        %952 = vmatpush1.bf16.xpose.msra.mxu0 %v698
        %953 = vmatprep.subr.bf16.mxu0 %v702
        %954 = vmatpush1.bf16.xpose.msra.mxu0 %v701
        %955 = vmatprep.subr.bf16.mxu0 %v705
        %956 = vmatpush1.bf16.xpose.msra.mxu0 %v704
        %957 = vmatprep.subr.bf16.mxu0 %v708
        %958 = vmatpush1.bf16.xpose.msra.mxu0 %v707
        %959 = vmatprep.subr.bf16.mxu0 %v711
        %960 = vmatpush1.bf16.xpose.msra.mxu0 %v710
        %961 = vmatprep.subr.bf16.mxu0 %v714
        %962 = vmatpush1.bf16.xpose.msra.mxu0 %v713
        %963 = vmatprep.subr.bf16.mxu0 %v717
        %964 = vmatpush1.bf16.xpose.msra.mxu0 %v716
        %965 = vmatprep.subr.bf16.mxu0 %v720
        %966 = vmatpush1.bf16.xpose.msra.mxu0 %v719
        %967 = vmatprep.subr.bf16.mxu0 %v723
        %968 = vmatpush1.bf16.xpose.msra.mxu0 %v722
        %969 = vmatprep.mubr.bf16.mxu0 %v353
        %970 = vmatmul.mubr.bf16.gmra.mrb[0].mxu0 %v352
        %v971 = vpop.f32.mrb[0].mxu0
        %v972 = vadd.f32 %v330, %v971
        %v973 = vpop.f32.mrb[0].mxu0
        %v974 = vadd.f32 %v334, %v973
        %v975 = vpop.f32.mrb[0].mxu0
        %v976 = vpop.f32.mrb[0].mxu0
        %977 = vdwg.mxu0
        %978 = vmatprep.subr.bf16.mxu0 0
        %979 = vmatpush1.bf16.xpose.msra.mxu0 %v842
        %980 = vmatprep.subr.bf16.mxu0 0
        %981 = vmatpush1.bf16.xpose.msra.mxu0 %v845
        %982 = vmatprep.subr.bf16.mxu0 0
        %983 = vmatpush1.bf16.xpose.msra.mxu0 %v848
        %984 = vmatprep.subr.bf16.mxu0 0
        %985 = vmatpush1.bf16.xpose.msra.mxu0 %v851
        %986 = vmatprep.subr.bf16.mxu0 0
        %987 = vmatpush1.bf16.xpose.msra.mxu0 %v854
        %988 = vmatprep.subr.bf16.mxu0 0
        %989 = vmatpush1.bf16.xpose.msra.mxu0 %v857
        %990 = vmatprep.subr.bf16.mxu0 0
        %991 = vmatpush1.bf16.xpose.msra.mxu0 %v860
        %992 = vmatprep.subr.bf16.mxu0 0
        %993 = vmatpush1.bf16.xpose.msra.mxu0 %v863
        %994 = vmatprep.subr.bf16.mxu0 0
        %995 = vmatpush1.bf16.xpose.msra.mxu0 %v866
        %996 = vmatprep.subr.bf16.mxu0 0
        %997 = vmatpush1.bf16.xpose.msra.mxu0 %v869
        %998 = vmatprep.subr.bf16.mxu0 0
        %999 = vmatpush1.bf16.xpose.msra.mxu0 %v872
        %1000 = vmatprep.subr.bf16.mxu0 0
        %1001 = vmatpush1.bf16.xpose.msra.mxu0 %v875
        %1002 = vmatprep.subr.bf16.mxu0 0
        %1003 = vmatpush1.bf16.xpose.msra.mxu0 %v878
        %1004 = vmatprep.subr.bf16.mxu0 0
        %1005 = vmatpush1.bf16.xpose.msra.mxu0 %v881
        %1006 = vmatprep.subr.bf16.mxu0 0
        %1007 = vmatpush1.bf16.xpose.msra.mxu0 %v884
        %1008 = vmatprep.subr.bf16.mxu0 0
        %1009 = vmatpush1.bf16.xpose.msra.mxu0 %v887
        %1010 = vmatprep.mubr.bf16.mxu0 0
        %1011 = vmatmul.mubr.bf16.gmra.mrb[0].mxu0 %v839
        %v1012 = vpop.f32.mrb[0].mxu0
        %v1013 = vadd.f32 %v972, %v1012
        %v1014 = vpop.f32.mrb[0].mxu0
        %v1015 = vadd.f32 %v974, %v1014
        %v1016 = vpop.f32.mrb[0].mxu0
        %v1017 = vpop.f32.mrb[0].mxu0
        %1018 = vdwg.mxu0
        %1019 = vmatprep.subr.bf16.mxu0 %v726
        %1020 = vmatpush1.bf16.xpose.msra.mxu0 %v725
        %1021 = vmatprep.subr.bf16.mxu0 %v729
        %1022 = vmatpush1.bf16.xpose.msra.mxu0 %v728
        %1023 = vmatprep.subr.bf16.mxu0 %v732
        %1024 = vmatpush1.bf16.xpose.msra.mxu0 %v731
        %1025 = vmatprep.subr.bf16.mxu0 %v735
        %1026 = vmatpush1.bf16.xpose.msra.mxu0 %v734
        %1027 = vmatprep.subr.bf16.mxu0 %v738
        %1028 = vmatpush1.bf16.xpose.msra.mxu0 %v737
        %1029 = vmatprep.subr.bf16.mxu0 %v741
        %1030 = vmatpush1.bf16.xpose.msra.mxu0 %v740
        %1031 = vmatprep.subr.bf16.mxu0 %v744
        %1032 = vmatpush1.bf16.xpose.msra.mxu0 %v743
        %1033 = vmatprep.subr.bf16.mxu0 %v747
        %1034 = vmatpush1.bf16.xpose.msra.mxu0 %v746
        %1035 = vmatprep.subr.bf16.mxu0 %v750
        %1036 = vmatpush1.bf16.xpose.msra.mxu0 %v749
        %1037 = vmatprep.subr.bf16.mxu0 %v753
        %1038 = vmatpush1.bf16.xpose.msra.mxu0 %v752
        %1039 = vmatprep.subr.bf16.mxu0 %v756
        %1040 = vmatpush1.bf16.xpose.msra.mxu0 %v755
        %1041 = vmatprep.subr.bf16.mxu0 %v759
        %1042 = vmatpush1.bf16.xpose.msra.mxu0 %v758
        %1043 = vmatprep.subr.bf16.mxu0 %v762
        %1044 = vmatpush1.bf16.xpose.msra.mxu0 %v761
        %1045 = vmatprep.subr.bf16.mxu0 %v765
        %1046 = vmatpush1.bf16.xpose.msra.mxu0 %v764
        %1047 = vmatprep.subr.bf16.mxu0 %v768
        %1048 = vmatpush1.bf16.xpose.msra.mxu0 %v767
        %1049 = vmatprep.subr.bf16.mxu0 %v771
        %1050 = vmatpush1.bf16.xpose.msra.mxu0 %v770
        %1051 = vmatprep.mubr.bf16.mxu0 %v353
        %1052 = vmatmul.mubr.bf16.gmra.mrb[0].mxu0 %v352
        %v1053 = vpop.f32.mrb[0].mxu0
        %v1054 = vadd.f32 %v338, %v1053
        %v1055 = vpop.f32.mrb[0].mxu0
        %v1056 = vadd.f32 %v342, %v1055
        %v1057 = vpop.f32.mrb[0].mxu0
        %v1058 = vpop.f32.mrb[0].mxu0
        %1059 = vdwg.mxu0
        %1060 = vmatprep.subr.bf16.mxu0 0
        %1061 = vmatpush1.bf16.xpose.msra.mxu0 %v890
        %1062 = vmatprep.subr.bf16.mxu0 0
        %1063 = vmatpush1.bf16.xpose.msra.mxu0 %v893
        %1064 = vmatprep.subr.bf16.mxu0 0
        %1065 = vmatpush1.bf16.xpose.msra.mxu0 %v896
        %1066 = vmatprep.subr.bf16.mxu0 0
        %1067 = vmatpush1.bf16.xpose.msra.mxu0 %v899
        %1068 = vmatprep.subr.bf16.mxu0 0
        %1069 = vmatpush1.bf16.xpose.msra.mxu0 %v902
        %1070 = vmatprep.subr.bf16.mxu0 0
        %1071 = vmatpush1.bf16.xpose.msra.mxu0 %v905
        %1072 = vmatprep.subr.bf16.mxu0 0
        %1073 = vmatpush1.bf16.xpose.msra.mxu0 %v908
        %1074 = vmatprep.subr.bf16.mxu0 0
        %1075 = vmatpush1.bf16.xpose.msra.mxu0 %v911
        %1076 = vmatprep.subr.bf16.mxu0 0
        %1077 = vmatpush1.bf16.xpose.msra.mxu0 %v914
        %1078 = vmatprep.subr.bf16.mxu0 0
        %1079 = vmatpush1.bf16.xpose.msra.mxu0 %v917
        %1080 = vmatprep.subr.bf16.mxu0 0
        %1081 = vmatpush1.bf16.xpose.msra.mxu0 %v920
        %1082 = vmatprep.subr.bf16.mxu0 0
        %1083 = vmatpush1.bf16.xpose.msra.mxu0 %v923
        %1084 = vmatprep.subr.bf16.mxu0 0
        %1085 = vmatpush1.bf16.xpose.msra.mxu0 %v926
        %1086 = vmatprep.subr.bf16.mxu0 0
        %1087 = vmatpush1.bf16.xpose.msra.mxu0 %v929
        %1088 = vmatprep.subr.bf16.mxu0 0
        %1089 = vmatpush1.bf16.xpose.msra.mxu0 %v932
        %1090 = vmatprep.subr.bf16.mxu0 0
        %1091 = vmatpush1.bf16.xpose.msra.mxu0 %v935
        %1092 = vmatprep.mubr.bf16.mxu0 0
        %1093 = vmatmul.mubr.bf16.gmra.mrb[0].mxu0 %v839
        %v1094 = vpop.f32.mrb[0].mxu0
        %v1095 = vadd.f32 %v1054, %v1094
        %v1096 = vpop.f32.mrb[0].mxu0
        %v1097 = vadd.f32 %v1056, %v1096
        %v1098 = vpop.f32.mrb[0].mxu0
        %v1099 = vpop.f32.mrb[0].mxu0
        %1100 = vdwg.mxu0
        %1101 = vst [vmem:[%s180] sm:$0xff] %v1013
        %1102 = vst [vmem:[%s180 + $0x8] sm:$0xff] %v1015
        %1103 = vst [vmem:[%s180 + $0x10] sm:$0xff] %v1095
        %1104 = vst [vmem:[%s180 + $0x18] sm:$0xff] %v1097
        %s1105 = sand.u32 %s98, 1
        %s1106 = scalar_lea.sflag [#allocation3], %s1105
        %s1107 = sand.u32 %s98, 1
        %s1108 = smul.addr %s1107, 32
        %s1109 = scalar_lea.vmem [#allocation2], %s1108
        // Predicated region
        $region33: #{word2vec_forward.1} parent=31 // pred_check
          %p1110 = pneg %p108
        $region34: #{word2vec_forward.1} parent=31 // pred_check_branch
          %1112 = sbr.rel (%p1110) target = $region36
        $region35: #{word2vec_forward.1} parent=31 // pred_region
          %s1113 = smul.u32 4, %s17
          %s1115 = ssub.s32 512, 512
          %1116 = vsyncadd %s1106, %s1115
          %s1117 = smul.addr %s1113, 128
          %s1118 = scalar_lea.hbm %s3, %s1117
          %s1120 = sshll.u32 %s1109, 4
          %s1121 = int_to_ptr.vmem [resolvable:$true] %s1120
          %1123 = dma.vmem_to_hbm [thread:$0]  %s1121, 512, %s1118, %s1106
        $region36: #{word2vec_forward.1} parent=31 // pred_fallthru
          _
      $region32: #{word2vec_forward.1} parent=5 // pred_fallthru
        _
      %p1124 = scmp.le.s32.totalorder 2, %s12
      // Predicated region
      $region37: #{word2vec_forward.1} parent=5 // pred_check
        %p1125 = pneg %p1124
      $region38: #{word2vec_forward.1} parent=5 // pred_check_branch
        %1127 = sbr.rel (%p1125) target = $region40
      $region39: #{word2vec_forward.1} parent=5 // pred_region
        %s1128 = ssub.s32 %s12, 2
        // Predicated region
        $region41: #{word2vec_forward.1} parent=39 // pred_check
          %p1129 = pneg %p114
        $region42: #{word2vec_forward.1} parent=39 // pred_check_branch
          %1131 = sbr.rel (%p1129) target = $region44
        $region43: #{word2vec_forward.1} parent=39 // pred_region
          %s1132 = sand.u32 %s99, 1
          %s1133 = scalar_lea.sflag [#allocation3], %s1132
          %s1134 = sand.u32 %s99, 1
          %s1135 = smul.addr %s1134, 32
          %s1136 = scalar_lea.vmem [#allocation2], %s1135
          %1137 = dma.done %s1133, 512
        $region44: #{word2vec_forward.1} parent=39 // pred_fallthru
          _
      $region40: #{word2vec_forward.1} parent=5 // pred_fallthru
        _
    $region6: #{word2vec_forward.1} parent=1 // loop_footer
      %s16 = sadd.s32 1, %s12
    $region7: #{word2vec_forward.1} parent=1 // loop_footer_branch
      %11 = sbr.rel target = $region3
    $region8: #{word2vec_forward.1} parent=1 // loop_exit
      _
    %1138 = vsyncpa [#allocation3], 1
    %s1139 = scalar_lea.sflag [#allocation3], 1
    %1140 = vsyncpa %s1139, 1

</llo_original>
